<compile_context>
chip_gen: v5e
topology: v5e:2x2
jax: 0.10.0
libtpu: 0.0.40
codegen_flags: <defaults>
</compile_context>

<pallas_src>
import jax
import jax.numpy as jnp
from jax.experimental import pallas as pl
from jax.experimental.pallas import tpu as pltpu

EPS = 1e-5

LANES = 128
SUBLANES = 8
MIN_TILE_P = SUBLANES * LANES          # 1024 pairs  -> one (8, 128) chunk
MAX_TILE_P = 64 * 1024                 # 64K pairs   -> 2 MiB coords tile/buffer


def _round_up(x, m):
    return ((x + m - 1) // m) * m


def _num_core_splits():
    """2 when a single JAX device spans two TensorCores (v4/v5p megacore, v7x);
    1 otherwise (v2/v3/v5e/v6e expose one TensorCore per device)."""
    try:
        kind = jax.devices()[0].device_kind.lower()
    except Exception:
        return 1
    return 2 if any(tag in kind for tag in ("v4", "v5p", "v7")) else 1


def _crossings_kernel(first_ref, last_ref, coords_ref, batch_ref, out_ref, acc_ref):
    # first_ref/last_ref: SMEM i32 [total_tiles] -- inclusive graph-id range/tile
    # coords_ref: [8, TR, 128] f32   (rows: ax, ay, bx, by, cx, cy, dx, dy)
    # batch_ref:  [TR, 128] i32      (-1 for padding)
    # out_ref:    [8, B_PAD] f32     (per-split output block; split dim squeezed)
    # acc_ref:    [num_graphs, 8, 128] f32 scratch (per-graph partial sums)
    c = pl.program_id(0)
    t = pl.program_id(1)
    tiles_per_split = pl.num_programs(1)
    tile_idx = c * tiles_per_split + t

    @pl.when(t == 0)
    def _init():
        acc_ref[...] = jnp.zeros_like(acc_ref)

    g_lo = first_ref[tile_idx]
    g_hi = last_ref[tile_idx]          # inclusive; g_hi < g_lo => all-padding tile

    n_chunks = coords_ref.shape[1] // SUBLANES

    def chunk_body(ci, carry):
        r = pl.multiple_of(ci * SUBLANES, SUBLANES)
        rows = pl.ds(r, SUBLANES)

        ax = coords_ref[0, rows, :]
        ay = coords_ref[1, rows, :]
        bx = coords_ref[2, rows, :]
        by = coords_ref[3, rows, :]
        cx = coords_ref[4, rows, :]
        cy = coords_ref[5, rows, :]
        dx = coords_ref[6, rows, :]
        dy = coords_ref[7, rows, :]

        # Orientation cross products.
        dcx, dcy = dx - cx, dy - cy              # D - C
        bax, bay = bx - ax, by - ay              # B - A
        d1 = dcx * (ay - cy) - dcy * (ax - cx)   # cross(D-C, A-C)
        d2 = dcx * (by - cy) - dcy * (bx - cx)   # cross(D-C, B-C)
        d3 = bax * (cy - ay) - bay * (cx - ax)   # cross(B-A, C-A)
        d4 = bax * (dy - ay) - bay * (dx - ax)   # cross(B-A, D-A)

        xing = jnp.where(
            jnp.logical_and(d1 * d2 < -EPS, d3 * d4 < -EPS),
            jnp.float32(1.0), jnp.float32(0.0))

        bb = batch_ref[rows, :]

        # Only graphs actually present in this tile (pairs are pre-sorted by
        # graph id, so this is typically a range of length 1-2).
        def graph_body(k, inner):
            acc_ref[k] = acc_ref[k] + jnp.where(bb == k, xing, jnp.float32(0.0))
            return inner

        jax.lax.fori_loop(g_lo, g_hi + 1, graph_body, 0)
        return carry

    jax.lax.fori_loop(0, n_chunks, chunk_body, 0)

    @pl.when(t == tiles_per_split - 1)
    def _finalize():
        lane = jax.lax.broadcasted_iota(jnp.int32, out_ref.shape, 1)
        out_ref[...] = jnp.zeros_like(out_ref)

        def fin_body(k, carry):
            s = jnp.sum(acc_ref[k])                       # [8,128] -> scalar (XLU)
            out_ref[...] = out_ref[...] + jnp.where(lane == k, s, jnp.float32(0.0))
            return carry

        jax.lax.fori_loop(0, acc_ref.shape[0], fin_body, 0)


def crossings(node_pos, edge_index, apsp, batch_index, edge_pair_index, num_graphs):
    """node_pos: [N,2] f32; batch_index: [N] i32; edge_pair_index: ((s1,s2),(e1,e2))."""
    del edge_index, apsp  # unused by the forward pass (kept for signature parity)
    (s1, s2), (e1, e2) = edge_pair_index

    p = int(s1.shape[0])
    num_graphs = int(num_graphs)
    if p == 0:
        return jnp.zeros((num_graphs,), jnp.float32)

    num_splits = _num_core_splits()

    # Tile sizing: dense (sublane, lane) tiles, bounded VMEM footprint.
    tile_p = min(MAX_TILE_P, _round_up(max(1, -(-p // num_splits)), MIN_TILE_P))
    p_pad = _round_up(p, num_splits * tile_p)
    tiles_per_split = p_pad // (num_splits * tile_p)
    total_tiles = num_splits * tiles_per_split
    tr = tile_p // LANES
    b_pad = max(LANES, _round_up(num_graphs, LANES))

    # Group pairs by graph id so each tile touches a small contiguous graph
    # range (required for the per-tile scalar-prefetch range loop).
    pair_batch = batch_index[s1].astype(jnp.int32)
    order = jnp.argsort(pair_batch)
    s1, e1, s2, e2 = s1[order], e1[order], s2[order], e2[order]
    pair_batch = pair_batch[order]

    # Per-tile inclusive graph-id ranges (scalar prefetch -> SMEM).
    starts = jnp.arange(total_tiles, dtype=jnp.int32) * tile_p
    ends = jnp.minimum(starts + tile_p, p) - 1
    valid = starts < p
    first_g = jnp.where(valid, pair_batch[jnp.minimum(starts, p - 1)], 0).astype(jnp.int32)
    last_g = jnp.where(valid, pair_batch[jnp.maximum(ends, 0)], -1).astype(jnp.int32)

    # Gather each coordinate as a 1-D vector; stack along the leading (major)
    # axis -> [8, P] without any minor-dim transpose.
    # TODO(synk): if a profile on v5e shows the XLA gather + coords round-trip
    # dominating, pass node_pos + index vectors instead and gather in-kernel.
    px = node_pos[:, 0].astype(jnp.float32)
    py = node_pos[:, 1].astype(jnp.float32)
    coords = jnp.stack(
        [px[s1], py[s1], px[e1], py[e1], px[s2], py[s2], px[e2], py[e2]], axis=0
    )                                                            # [8, P]
    coords = jnp.pad(coords, ((0, 0), (0, p_pad - p)))
    coords = coords.reshape(8, p_pad // LANES, LANES)            # [8, P_pad/128, 128]

    batch_tiled = jnp.pad(
        pair_batch, (0, p_pad - p), constant_values=-1
    ).reshape(p_pad // LANES, LANES)                             # [P_pad/128, 128]

    # TODO(synk): for num_graphs >~ 6000 the (num_graphs, 8, 128) accumulator
    # outgrows the scoped-VMEM budget; split the graph axis across multiple
    # pallas_calls in that regime.
    out = pl.pallas_call(
        _crossings_kernel,
        out_shape=jax.ShapeDtypeStruct((num_splits, SUBLANES, b_pad), jnp.float32),
        grid_spec=pltpu.PrefetchScalarGridSpec(
            num_scalar_prefetch=2,
            grid=(num_splits, tiles_per_split),
            in_specs=[
                pl.BlockSpec(
                    (8, tr, LANES),
                    lambda c, t, fg, lg: (0, c * tiles_per_split + t, 0),
                ),
                pl.BlockSpec(
                    (tr, LANES),
                    lambda c, t, fg, lg: (c * tiles_per_split + t, 0),
                ),
            ],
            out_specs=pl.BlockSpec(
                (None, SUBLANES, b_pad), lambda c, t, fg, lg: (c, 0, 0)
            ),
            scratch_shapes=[pltpu.VMEM((num_graphs, SUBLANES, LANES), jnp.float32)],
        ),
        compiler_params=pltpu.CompilerParams(
            dimension_semantics=("parallel", "arbitrary"),
            vmem_limit_bytes=32 * 1024 * 1024,
        ),
    )(first_g, last_g, coords, batch_tiled)

    # Sum the per-split rows; slice the lane-padded graph axis.
    return out[:, 0, :num_graphs].sum(axis=0)                    # [num_graphs]


def crossings_reference(node_pos, batch_index, edge_pair_index, num_graphs):
    (s1, s2), (e1, e2) = edge_pair_index
    a, b, c, d = node_pos[s1], node_pos[e1], node_pos[s2], node_pos[e2]

    def cross(u, v):
        return u[:, 0] * v[:, 1] - u[:, 1] * v[:, 0]

    d1 = cross(d - c, a - c)
    d2 = cross(d - c, b - c)
    d3 = cross(b - a, c - a)
    d4 = cross(b - a, d - a)
    xing = ((d1 * d2 < -EPS) & (d3 * d4 < -EPS)).astype(jnp.float32)
    return jax.ops.segment_sum(xing, batch_index[s1], num_segments=num_graphs)


if __name__ == "__main__":
    key = jax.random.PRNGKey(0)

    # Two graphs with 8 nodes each.
    N = 16
    num_graphs = 2
    node_pos = jax.random.normal(key, (N, 2), dtype=jnp.float32)
    batch_index = jnp.array([0] * 8 + [1] * 8, dtype=jnp.int32)

    # Deterministic edge list (same topology in both graphs, offset by 8).
    base_edges = [(0, 1), (2, 3), (4, 5), (6, 7), (0, 3), (1, 6), (2, 5), (4, 7)]
    edges = []
    for off in (0, 8):
        edges += [(u + off, v + off) for (u, v) in base_edges]
    edge_index = jnp.array(edges, dtype=jnp.int32).T          # [2, E]
    apsp = jnp.zeros((N, N), dtype=jnp.float32)               # unused by forward

    # Edge pairs: same graph, no shared endpoints.
    s1l, e1l, s2l, e2l = [], [], [], []
    for i in range(len(edges)):
        for j in range(i + 1, len(edges)):
            ui, vi = edges[i]
            uj, vj = edges[j]
            if (ui // 8) == (uj // 8) and len({ui, vi, uj, vj}) == 4:
                s1l.append(ui); e1l.append(vi); s2l.append(uj); e2l.append(vj)
    s1 = jnp.array(s1l, dtype=jnp.int32)
    e1 = jnp.array(e1l, dtype=jnp.int32)
    s2 = jnp.array(s2l, dtype=jnp.int32)
    e2 = jnp.array(e2l, dtype=jnp.int32)
    edge_pair_index = ((s1, s2), (e1, e2))

    out = crossings(node_pos, edge_index, apsp, batch_index, edge_pair_index, num_graphs)
    out = jax.block_until_ready(out)

    ref = crossings_reference(node_pos, batch_index, edge_pair_index, num_graphs)
    assert out.shape == (num_graphs,) and out.dtype == jnp.float32
    assert jnp.allclose(out, ref), (out, ref)

    print("KERNEL_OK")
</pallas_src>

<mosaic_0001>
module attributes {stable_mosaic.version = 11 : i64} {
  func.func @_crossings_kernel(%arg0: i32, %arg1: i32, %arg2: memref<1xi32, #tpu.memory_space<smem>>, %arg3: memref<1xi32, #tpu.memory_space<smem>>, %arg4: memref<8x8x128xf32, #tpu.memory_space<vmem>>, %arg5: memref<8x128xi32, #tpu.memory_space<vmem>>, %arg6: memref<1x8x128xf32, #tpu.memory_space<vmem>>, %arg7: memref<2x8x128xf32, #tpu.memory_space<vmem>>) attributes {dimension_semantics = [#tpu.dimension_semantics<parallel>, #tpu.dimension_semantics<arbitrary>], iteration_bounds = array<i64: 1, 1>, scalar_prefetch = 2 : i64, scratch_operands = 1 : i64, tpu.core_type = #tpu.core_type<tc>, window_params = [{transform_indices = @transform_0, window_bounds = array<i64: 8, 8, 128>}, {transform_indices = @transform_1, window_bounds = array<i64: 8, 128>}, {transform_indices = @transform_2, window_bounds = array<i64: 1, 8, 128>}]} {
    %c1_i32 = arith.constant 1 : i32
    %0 = arith.muli %arg0, %c1_i32 : i32
    %1 = arith.addi %0, %arg1 : i32
    %c0_i32 = arith.constant 0 : i32
    %2 = arith.cmpi eq, %arg1, %c0_i32 : i32
    %3 = arith.extui %2 : i1 to i32
    %c0_i32_0 = arith.constant 0 : i32
    %4 = arith.cmpi ne, %3, %c0_i32_0 : i32
    scf.if %4 {
      %cst_20 = arith.constant 0.000000e+00 : f32
      %77 = vector.broadcast %cst_20 : f32 to vector<2x8x128xf32>
      %c0_21 = arith.constant 0 : index
      %c0_22 = arith.constant 0 : index
      %c0_23 = arith.constant 0 : index
      %78 = vector.load %arg7[%c0_21, %c0_22, %c0_23] : memref<2x8x128xf32, #tpu.memory_space<vmem>>, vector<2x8x128xf32>
      tpu.vector_store %arg7[%c0_21, %c0_22, %c0_23], %77 {strides = array<i32>} : memref<2x8x128xf32, #tpu.memory_space<vmem>>, vector<2x8x128xf32>,
    } else {
    }
    %5 = arith.index_cast %1 : i32 to index
    %6 = memref.load %arg2[%5] : memref<1xi32, #tpu.memory_space<smem>>
    %7 = arith.index_cast %1 : i32 to index
    %8 = memref.load %arg3[%7] : memref<1xi32, #tpu.memory_space<smem>>
    %c0_i32_1 = arith.constant 0 : i32
    %c8_i32 = arith.constant 8 : i32
    %9 = arith.muli %c0_i32_1, %c8_i32 : i32
    %10 = tpu.assume_multiple %9, 8 : i32
    %c0 = arith.constant 0 : index
    %11 = arith.index_cast %10 : i32 to index
    %c0_2 = arith.constant 0 : index
    %12 = vector.load %arg4[%c0, %11, %c0_2] : memref<8x8x128xf32, #tpu.memory_space<vmem>>, vector<1x8x128xf32>
    %13 = vector.shape_cast %12 : vector<1x8x128xf32> to vector<8x128xf32>
    %c1 = arith.constant 1 : index
    %14 = arith.index_cast %10 : i32 to index
    %c0_3 = arith.constant 0 : index
    %15 = vector.load %arg4[%c1, %14, %c0_3] : memref<8x8x128xf32, #tpu.memory_space<vmem>>, vector<1x8x128xf32>
    %16 = vector.shape_cast %15 : vector<1x8x128xf32> to vector<8x128xf32>
    %c2 = arith.constant 2 : index
    %17 = arith.index_cast %10 : i32 to index
    %c0_4 = arith.constant 0 : index
    %18 = vector.load %arg4[%c2, %17, %c0_4] : memref<8x8x128xf32, #tpu.memory_space<vmem>>, vector<1x8x128xf32>
    %19 = vector.shape_cast %18 : vector<1x8x128xf32> to vector<8x128xf32>
    %c3 = arith.constant 3 : index
    %20 = arith.index_cast %10 : i32 to index
    %c0_5 = arith.constant 0 : index
    %21 = vector.load %arg4[%c3, %20, %c0_5] : memref<8x8x128xf32, #tpu.memory_space<vmem>>, vector<1x8x128xf32>
    %22 = vector.shape_cast %21 : vector<1x8x128xf32> to vector<8x128xf32>
    %c4 = arith.constant 4 : index
    %23 = arith.index_cast %10 : i32 to index
    %c0_6 = arith.constant 0 : index
    %24 = vector.load %arg4[%c4, %23, %c0_6] : memref<8x8x128xf32, #tpu.memory_space<vmem>>, vector<1x8x128xf32>
    %25 = vector.shape_cast %24 : vector<1x8x128xf32> to vector<8x128xf32>
    %c5 = arith.constant 5 : index
    %26 = arith.index_cast %10 : i32 to index
    %c0_7 = arith.constant 0 : index
    %27 = vector.load %arg4[%c5, %26, %c0_7] : memref<8x8x128xf32, #tpu.memory_space<vmem>>, vector<1x8x128xf32>
    %28 = vector.shape_cast %27 : vector<1x8x128xf32> to vector<8x128xf32>
    %c6 = arith.constant 6 : index
    %29 = arith.index_cast %10 : i32 to index
    %c0_8 = arith.constant 0 : index
    %30 = vector.load %arg4[%c6, %29, %c0_8] : memref<8x8x128xf32, #tpu.memory_space<vmem>>, vector<1x8x128xf32>
    %31 = vector.shape_cast %30 : vector<1x8x128xf32> to vector<8x128xf32>
    %c7 = arith.constant 7 : index
    %32 = arith.index_cast %10 : i32 to index
    %c0_9 = arith.constant 0 : index
    %33 = vector.load %arg4[%c7, %32, %c0_9] : memref<8x8x128xf32, #tpu.memory_space<vmem>>, vector<1x8x128xf32>
    %34 = vector.shape_cast %33 : vector<1x8x128xf32> to vector<8x128xf32>
    %35 = arith.subf %31, %25 : vector<8x128xf32>
    %36 = arith.subf %34, %28 : vector<8x128xf32>
    %37 = arith.subf %19, %13 : vector<8x128xf32>
    %38 = arith.subf %22, %16 : vector<8x128xf32>
    %39 = arith.subf %16, %28 : vector<8x128xf32>
    %40 = arith.mulf %35, %39 : vector<8x128xf32>
    %41 = arith.subf %13, %25 : vector<8x128xf32>
    %42 = arith.mulf %36, %41 : vector<8x128xf32>
    %43 = arith.subf %40, %42 : vector<8x128xf32>
    %44 = arith.subf %22, %28 : vector<8x128xf32>
    %45 = arith.mulf %35, %44 : vector<8x128xf32>
    %46 = arith.subf %19, %25 : vector<8x128xf32>
    %47 = arith.mulf %36, %46 : vector<8x128xf32>
    %48 = arith.subf %45, %47 : vector<8x128xf32>
    %49 = arith.subf %28, %16 : vector<8x128xf32>
    %50 = arith.mulf %37, %49 : vector<8x128xf32>
    %51 = arith.subf %25, %13 : vector<8x128xf32>
    %52 = arith.mulf %38, %51 : vector<8x128xf32>
    %53 = arith.subf %50, %52 : vector<8x128xf32>
    %54 = arith.subf %34, %16 : vector<8x128xf32>
    %55 = arith.mulf %37, %54 : vector<8x128xf32>
    %56 = arith.subf %31, %13 : vector<8x128xf32>
    %57 = arith.mulf %38, %56 : vector<8x128xf32>
    %58 = arith.subf %55, %57 : vector<8x128xf32>
    %59 = arith.mulf %43, %48 : vector<8x128xf32>
    %cst = arith.constant -9.99999974E-6 : f32
    %60 = vector.broadcast %cst : f32 to vector<8x128xf32>
    %61 = arith.cmpf olt, %59, %60 : vector<8x128xf32>
    %62 = arith.mulf %53, %58 : vector<8x128xf32>
    %cst_10 = arith.constant -9.99999974E-6 : f32
    %63 = vector.broadcast %cst_10 : f32 to vector<8x128xf32>
    %64 = arith.cmpf olt, %62, %63 : vector<8x128xf32>
    %65 = arith.andi %61, %64 : vector<8x128xi1>
    %cst_11 = arith.constant 1.000000e+00 : f32
    %cst_12 = arith.constant 0.000000e+00 : f32
    %66 = vector.broadcast %cst_11 : f32 to vector<8x128xf32>
    %67 = vector.broadcast %cst_12 : f32 to vector<8x128xf32>
    %68 = arith.select %65, %66, %67 : vector<8x128xi1>, vector<8x128xf32>
    %69 = arith.index_cast %10 : i32 to index
    %c0_13 = arith.constant 0 : index
    %70 = vector.load %arg5[%69, %c0_13] : memref<8x128xi32, #tpu.memory_space<vmem>>, vector<8x128xi32>
    %c1_i32_14 = arith.constant 1 : i32
    %71 = arith.addi %8, %c1_i32_14 : i32
    %c0_i32_15 = arith.constant 0 : i32
    %72 = arith.subi %71, %6 : i32
    %73 = arith.addi %6, %72 : i32
    %c1_i32_16 = arith.constant 1 : i32
    scf.for %arg8 = %6 to %73 step %c1_i32_16  : i32 {
      %77 = arith.index_cast %arg8 : i32 to index
      %c0_20 = arith.constant 0 : index
      %c0_21 = arith.constant 0 : index
      %78 = vector.load %arg7[%77, %c0_20, %c0_21] : memref<2x8x128xf32, #tpu.memory_space<vmem>>, vector<1x8x128xf32>
      %79 = vector.shape_cast %78 : vector<1x8x128xf32> to vector<8x128xf32>
      %80 = vector.broadcast %arg8 : i32 to vector<8x128xi32>
      %81 = arith.cmpi eq, %70, %80 : vector<8x128xi32>
      %cst_22 = arith.constant 0.000000e+00 : f32
      %82 = vector.broadcast %cst_22 : f32 to vector<8x128xf32>
      %83 = arith.select %81, %68, %82 : vector<8x128xi1>, vector<8x128xf32>
      %84 = arith.addf %79, %83 : vector<8x128xf32>
      %85 = arith.index_cast %arg8 : i32 to index
      %c0_23 = arith.constant 0 : index
      %c0_24 = arith.constant 0 : index
      %86 = vector.load %arg7[%85, %c0_23, %c0_24] : memref<2x8x128xf32, #tpu.memory_space<vmem>>, vector<1x8x128xf32>
      %87 = vector.shape_cast %86 : vector<1x8x128xf32> to vector<8x128xf32>
      %88 = vector.shape_cast %84 : vector<8x128xf32> to vector<1x8x128xf32>
      tpu.vector_store %arg7[%85, %c0_23, %c0_24], %88 {strides = array<i32>} : memref<2x8x128xf32, #tpu.memory_space<vmem>>, vector<1x8x128xf32>,
    }
    %c1_i32_17 = arith.constant 1 : i32
    %c0_i32_18 = arith.constant 0 : i32
    %74 = arith.cmpi eq, %arg1, %c0_i32_18 : i32
    %75 = arith.extui %74 : i1 to i32
    %c0_i32_19 = arith.constant 0 : i32
    %76 = arith.cmpi ne, %75, %c0_i32_19 : i32
    scf.if %76 {
      %77 = tpu.iota {dimensions = array<i32: 1>} : vector<8x128xi32>
      %cst_20 = arith.constant 0.000000e+00 : f32
      %78 = vector.broadcast %cst_20 : f32 to vector<8x128xf32>
      %c0_21 = arith.constant 0 : index
      %c0_22 = arith.constant 0 : index
      %c0_23 = arith.constant 0 : index
      %79 = vector.load %arg6[%c0_21, %c0_22, %c0_23] : memref<1x8x128xf32, #tpu.memory_space<vmem>>, vector<1x8x128xf32>
      %80 = vector.shape_cast %79 : vector<1x8x128xf32> to vector<8x128xf32>
      %81 = vector.shape_cast %78 : vector<8x128xf32> to vector<1x8x128xf32>
      tpu.vector_store %arg6[%c0_21, %c0_22, %c0_23], %81 {strides = array<i32>} : memref<1x8x128xf32, #tpu.memory_space<vmem>>, vector<1x8x128xf32>,
      %c0_i32_24 = arith.constant 0 : i32
      %c2_i32 = arith.constant 2 : i32
      %82 = arith.addi %c0_i32_24, %c2_i32 : i32
      %c1_i32_25 = arith.constant 1 : i32
      scf.for %arg8 = %c0_i32_24 to %82 step %c1_i32_25  : i32 {
        %83 = arith.index_cast %arg8 : i32 to index
        %c0_27 = arith.constant 0 : index
        %c0_28 = arith.constant 0 : index
        %84 = vector.load %arg7[%83, %c0_27, %c0_28] : memref<2x8x128xf32, #tpu.memory_space<vmem>>, vector<1x8x128xf32>
        %85 = vector.shape_cast %84 : vector<1x8x128xf32> to vector<8x128xf32>
        %86 = vector.shape_cast %85 : vector<8x128xf32> to vector<1x8x128xf32>
        %cst_29 = arith.constant dense<0.000000e+00> : vector<1xf32>
        %87 = vector.multi_reduction <add>, %86, %cst_29 [1, 2] : vector<1x8x128xf32> to vector<1xf32>
        %88 = vector.shape_cast %87 : vector<1xf32> to vector<1x1x1xf32>
        %89 = vector.extract %88[0, 0, 0] : f32 from vector<1x1x1xf32>
        %c0_30 = arith.constant 0 : index
        %c0_31 = arith.constant 0 : index
        %c0_32 = arith.constant 0 : index
        %90 = vector.load %arg6[%c0_30, %c0_31, %c0_32] : memref<1x8x128xf32, #tpu.memory_space<vmem>>, vector<1x8x128xf32>
        %91 = vector.shape_cast %90 : vector<1x8x128xf32> to vector<8x128xf32>
        %92 = vector.broadcast %arg8 : i32 to vector<8x128xi32>
        %93 = arith.cmpi eq, %77, %92 : vector<8x128xi32>
        %cst_33 = arith.constant 0.000000e+00 : f32
        %94 = vector.broadcast %89 : f32 to vector<8x128xf32>
        %95 = vector.broadcast %cst_33 : f32 to vector<8x128xf32>
        %96 = arith.select %93, %94, %95 : vector<8x128xi1>, vector<8x128xf32>
        %97 = arith.addf %91, %96 : vector<8x128xf32>
        %c0_34 = arith.constant 0 : index
        %c0_35 = arith.constant 0 : index
        %c0_36 = arith.constant 0 : index
        %98 = vector.load %arg6[%c0_34, %c0_35, %c0_36] : memref<1x8x128xf32, #tpu.memory_space<vmem>>, vector<1x8x128xf32>
        %99 = vector.shape_cast %98 : vector<1x8x128xf32> to vector<8x128xf32>
        %100 = vector.shape_cast %97 : vector<8x128xf32> to vector<1x8x128xf32>
        tpu.vector_store %arg6[%c0_34, %c0_35, %c0_36], %100 {strides = array<i32>} : memref<1x8x128xf32, #tpu.memory_space<vmem>>, vector<1x8x128xf32>,
      }
      %c2_i32_26 = arith.constant 2 : i32
    } else {
    }
    return
  }
  func.func @transform_0(%arg0: i32, %arg1: i32, %arg2: memref<1xi32, #tpu.memory_space<smem>>, %arg3: memref<1xi32, #tpu.memory_space<smem>>) -> (i32, i32, i32) {
    %c1_i32 = arith.constant 1 : i32
    %0 = arith.muli %arg0, %c1_i32 : i32
    %1 = arith.addi %0, %arg1 : i32
    %c0_i32 = arith.constant 0 : i32
    %c0_i32_0 = arith.constant 0 : i32
    %c0_i32_1 = arith.constant 0 : i32
    return %c0_i32, %1, %c0_i32_0 : i32, i32, i32
  }
  func.func @transform_1(%arg0: i32, %arg1: i32, %arg2: memref<1xi32, #tpu.memory_space<smem>>, %arg3: memref<1xi32, #tpu.memory_space<smem>>) -> (i32, i32) {
    %c1_i32 = arith.constant 1 : i32
    %0 = arith.muli %arg0, %c1_i32 : i32
    %1 = arith.addi %0, %arg1 : i32
    %c0_i32 = arith.constant 0 : i32
    %c0_i32_0 = arith.constant 0 : i32
    return %1, %c0_i32 : i32, i32
  }
  func.func @transform_2(%arg0: i32, %arg1: i32, %arg2: memref<1xi32, #tpu.memory_space<smem>>, %arg3: memref<1xi32, #tpu.memory_space<smem>>) -> (i32, i32, i32) {
    %c0_i32 = arith.constant 0 : i32
    %c0_i32_0 = arith.constant 0 : i32
    %c0_i32_1 = arith.constant 0 : i32
    return %arg0, %c0_i32, %c0_i32_0 : i32, i32, i32
  }
}

</mosaic_0001>

<llo_original>
// kernel: tpu_custom_call.1
$region0: #{tpu_custom_call.1}
  #allocation0 [shape = 'u32[]', space=smem, size = 0x4, offset = 0x4, fixed_abs, tag = 'smem constant byte address 0x4 - core index']
  #allocation1 [shape = 'u32[72,128]{1,0:T(1,128)}', space=vmem, size = 0x9000, scoped, tag = 'internal scratch']
  #allocation2 [shape = 'f32[2,8,128]{2,1,0:T(8,128)}', space=vmem, size = 0x2000, scoped, tag = 'scratch operand']
  #allocation3 [shape = 's32[1]{0}', space=sflag, size = 0x4, scoped, tag = 'scoped memory for tpu_custom_call.1']
  #allocation4 [shape = 's32[1]{0:T(128)S(6)}', space=smem, size = 0x200, scoped, tag = 'prefetched SMEM operand 0']
  #allocation5 [shape = 's32[1]{0:T(128)S(6)}', space=smem, size = 0x200, scoped, tag = 'prefetched SMEM operand 1']
  %s0 = inlined_call_operand.<no memory space> [shape: s32[1], index: 0, kind: input, shape index: {}]
  %s1 = inlined_call_operand.<no memory space> [shape: s32[1], index: 1, kind: input, shape index: {}]
  %s2 = inlined_call_operand.hbm [shape: f32[8,8,128], index: 2, kind: input, shape index: {}]
  %s3 = inlined_call_operand.hbm [shape: s32[8,128], index: 3, kind: input, shape index: {}]
  %s4 = inlined_call_operand.hbm [shape: f32[1,8,128], index: 4, kind: output, shape index: {}]
  %s5 = sld [smem:[#allocation0]]
  $region48: #{tpu_custom_call.1} parent=0
    _
  %s7 = ssub.s32 1, %s5
  %s8 = scalar_select 0, %s7, %s5
  %9 = sst [smem:[#allocation4]] %s0
  %10 = sst [smem:[#allocation5]] %s1
  $region1: #{tpu_custom_call.1} parent=0
    #allocation6 [shape = 'u8[32768]{0}', space=vmem, size = 0x8000, scoped, tag = 'input window, operand 2, single buffered']
    #allocation7 [shape = 's32[1]{0}', space=sflag, size = 0x4, scoped, tag = 'scoped memory for tpu_custom_call.1']
    #allocation8 [shape = 's32[1]{0}', space=sflag, size = 0x4, scoped, tag = 'scoped memory for tpu_custom_call.1']
    #allocation9 [shape = 'u8[4096]{0}', space=vmem, size = 0x1000, scoped, tag = 'input window, operand 3, single buffered']
    #allocation10 [shape = 's32[1]{0}', space=sflag, size = 0x4, scoped, tag = 'scoped memory for tpu_custom_call.1']
    #allocation11 [shape = 'u8[4096]{0}', space=vmem, size = 0x1000, scoped, tag = 'output window, operand 0, single buffered']
    %11 = vsyncpa [#allocation7], 0
    %12 = vsyncpa [#allocation10], 0
    %13 = vsyncpa [#allocation8], 0
    // Predicated region
    $region2: #{tpu_custom_call.1} parent=1 // pred_check
      _
    $region3: #{tpu_custom_call.1} parent=1 // pred_check_branch
      %15 = sbr.rel (0) target = $region5
    $region4: #{tpu_custom_call.1} parent=1 // pred_region
      %s16 = sadd.s32 0, 0
      %18 = vsyncadd [#allocation7], 0
      %s19 = smul.addr %s16, 8
      %s20 = scalar_lea.hbm %s2, %s19
      %s21 = sshll.u32 %s20, 4
      %s22 = int_to_ptr.hbm [resolvable:$true] %s21
      %s23 = sshll.u32 [#allocation6], 4
      %s24 = int_to_ptr.vmem [resolvable:$true] %s23
      %29 = dma.hbm_to_vmem [thread:$0]  %s22, 1024, %s24, [#allocation7], 128, 128, 8
    $region5: #{tpu_custom_call.1} parent=1 // pred_fallthru
      _
    // Predicated region
    $region6: #{tpu_custom_call.1} parent=1 // pred_check
      _
    $region7: #{tpu_custom_call.1} parent=1 // pred_check_branch
      %31 = sbr.rel (0) target = $region9
    $region8: #{tpu_custom_call.1} parent=1 // pred_region
      %s32 = sadd.s32 0, 0
      %34 = vsyncadd [#allocation10], 0
      %s35 = smul.addr %s32, 8
      %s36 = scalar_lea.hbm %s3, %s35
      %s38 = sshll.u32 %s36, 4
      %s39 = int_to_ptr.hbm [resolvable:$true] %s38
      %s40 = sshll.u32 [#allocation9], 4
      %s41 = int_to_ptr.vmem [resolvable:$true] %s40
      %43 = dma.hbm_to_vmem [thread:$0]  %s39, 128, %s41, [#allocation10]
    $region9: #{tpu_custom_call.1} parent=1 // pred_fallthru
      _
    // Predicated region
    $region10: #{tpu_custom_call.1} parent=1 // pred_check
      _
    $region11: #{tpu_custom_call.1} parent=1 // pred_check_branch
      %45 = sbr.rel (0) target = $region13
    $region12: #{tpu_custom_call.1} parent=1 // pred_region
      %47 = dma.done [#allocation7], 1024
    $region13: #{tpu_custom_call.1} parent=1 // pred_fallthru
      _
    // Predicated region
    $region14: #{tpu_custom_call.1} parent=1 // pred_check
      _
    $region15: #{tpu_custom_call.1} parent=1 // pred_check_branch
      %49 = sbr.rel (0) target = $region17
    $region16: #{tpu_custom_call.1} parent=1 // pred_region
      %51 = dma.done [#allocation10], 128
    $region17: #{tpu_custom_call.1} parent=1 // pred_fallthru
      _
    %s52 = sadd.s32 0, 0
    %s53 = sadd.s32 0, 0
    %s54 = sadd.s32 0, 0
    %p55 = scmp.eq.s32.totalorder 0, 0
    // Predicated region
    $region18: #{tpu_custom_call.1} parent=1 // pred_check
      %p56 = pneg %p55
    $region19: #{tpu_custom_call.1} parent=1 // pred_check_branch
      %58 = sbr.rel (%p56) target = $region21
    $region20: #{tpu_custom_call.1} parent=1 // pred_region
      %59 = vst [vmem:[#allocation2] sm:$0xff] 0.0
      %60 = vst [vmem:[#allocation2 + $0x8] sm:$0xff] 0.0
    $region21: #{tpu_custom_call.1} parent=1 // pred_fallthru
      _
    %s61 = sld [smem:[#allocation4 + %s54]]
    %s62 = sld [smem:[#allocation5 + %s54]]
    %v63 = vld [vmem:[#allocation6] sm:$0xff]
    %s64 = sadd.s32 0, 8
    %s65 = scalar_lea.vmem [#allocation6], %s64
    %v66 = vld [vmem:[%s65] sm:$0xff]
    %s67 = sadd.s32 0, 16
    %s68 = scalar_lea.vmem [#allocation6], %s67
    %v69 = vld [vmem:[%s68] sm:$0xff]
    %s70 = sadd.s32 0, 24
    %s71 = scalar_lea.vmem [#allocation6], %s70
    %v72 = vld [vmem:[%s71] sm:$0xff]
    %s73 = sadd.s32 0, 32
    %s74 = scalar_lea.vmem [#allocation6], %s73
    %v75 = vld [vmem:[%s74] sm:$0xff]
    %s76 = sadd.s32 0, 40
    %s77 = scalar_lea.vmem [#allocation6], %s76
    %v78 = vld [vmem:[%s77] sm:$0xff]
    %s79 = sadd.s32 0, 48
    %s80 = scalar_lea.vmem [#allocation6], %s79
    %v81 = vld [vmem:[%s80] sm:$0xff]
    %s82 = sadd.s32 0, 56
    %s83 = scalar_lea.vmem [#allocation6], %s82
    %v84 = vld [vmem:[%s83] sm:$0xff]
    %v85 = vsub.f32 %v81, %v75
    %v86 = vsub.f32 %v84, %v78
    %v87 = vsub.f32 %v69, %v63
    %v88 = vsub.f32 %v72, %v66
    %v89 = vsub.f32 %v66, %v78
    %v90 = vmul.f32 %v85, %v89
    %v91 = vsub.f32 %v63, %v75
    %v92 = vmul.f32 %v86, %v91
    %v93 = vsub.f32 %v90, %v92
    %v94 = vsub.f32 %v72, %v78
    %v95 = vmul.f32 %v85, %v94
    %v96 = vsub.f32 %v69, %v75
    %v97 = vmul.f32 %v86, %v96
    %v98 = vsub.f32 %v95, %v97
    %v99 = vsub.f32 %v78, %v66
    %v100 = vmul.f32 %v87, %v99
    %v101 = vsub.f32 %v75, %v63
    %v102 = vmul.f32 %v88, %v101
    %v103 = vsub.f32 %v100, %v102
    %v104 = vsub.f32 %v84, %v66
    %v105 = vmul.f32 %v87, %v104
    %v106 = vsub.f32 %v81, %v63
    %v107 = vmul.f32 %v88, %v106
    %v108 = vsub.f32 %v105, %v107
    %v109 = vmul.f32 %v93, %v98
    %vm110 = vcmp.lt.f32.partialorder %v109, -1e-05
    %v111 = vmul.f32 %v103, %v108
    %vm112 = vcmp.lt.f32.partialorder %v111, -1e-05
    %vm113 = vmand %vm110, %vm112
    %v114 = vsel %vm113, 1.0, 0.0
    %v115 = vld [vmem:[#allocation9] sm:$0xff]
    %s116 = sadd.s32 %s62, 1
    // While loop
    $region22: #{tpu_custom_call.1} parent=1 // loop_pre_header
      _
    $region23: #{tpu_custom_call.1} parent=1 // loop_header
      %s118 = sphi %s61, %s120
      %p119 = scmp.ge.s32.totalorder %s118, %s116
    $region24: #{tpu_custom_call.1} parent=1 // loop_header_branch
      %122 = sbr.rel (%p119) target = $region28
    $region25: #{tpu_custom_call.1} parent=1 // loop_body
      %s123 = smul.u32 %s118, 8
      %s124 = scalar_lea.vmem [#allocation2], %s123
      %v125 = vld [vmem:[%s124] sm:$0xff]
      %v126 = vstv %s118
      %vm127 = vcmp.eq.s32.totalorder %v115, %v126
      %v128 = vsel %vm127, %v114, 0.0
      %v129 = vadd.f32 %v125, %v128
      %130 = vst [vmem:[%s124] sm:$0xff] %v129
    $region26: #{tpu_custom_call.1} parent=1 // loop_footer
      %s120 = sadd.s32 %s118, 1
    $region27: #{tpu_custom_call.1} parent=1 // loop_footer_branch
      %117 = sbr.rel target = $region23
    $region28: #{tpu_custom_call.1} parent=1 // loop_exit
      _
    // Predicated region
    $region29: #{tpu_custom_call.1} parent=1 // pred_check
      %p131 = pneg %p55
    $region30: #{tpu_custom_call.1} parent=1 // pred_check_branch
      %133 = sbr.rel (%p131) target = $region32
    $region31: #{tpu_custom_call.1} parent=1 // pred_region
      %v134 = vlaneseq
      %v135 = vand.u32 %v134, 127
      %136 = vst [vmem:[#allocation11] sm:$0xff] 0.0
      loop: start=0, step=1, limit=2
      $region33: #{tpu_custom_call.1} parent=31 // loop_pre_header
        _
      $region34: #{tpu_custom_call.1} parent=31 // loop_header
        %s138 = sphi 0, %s142
        %p139 = scmp.ge.s32.totalorder %s138, 2
      $region35: #{tpu_custom_call.1} parent=31 // loop_header_branch
        %141 = sbr.rel (%p139) target = $region39
      $region36: #{tpu_custom_call.1} parent=31 // loop_body
        %s143 = smul.u32 %s138, 8
        %s144 = scalar_lea.vmem [#allocation2], %s143
        %v145 = vld [vmem:[%s144] sm:$0xff]
        %146 = vadd.xlane.f32.xlu0 %v145
        %v147 = vpop.xlane.xlu0 %146
        %v148 = vrot.slane %v147, 4
        %v149 = vadd.f32 %v147, %v148
        %v150 = vrot.slane %v149, 2
        %v151 = vadd.f32 %v149, %v150
        %v152 = vrot.slane %v151, 1
        %v153 = vadd.f32 %v151, %v152
        %s154 = vtos %v153
        %v155 = vld [vmem:[#allocation11] sm:$0xff]
        %v156 = vstv %s138
        %vm157 = vcmp.eq.s32.totalorder %v135, %v156
        %v158 = vstv %s154
        %v159 = vsel %vm157, %v158, 0.0
        %v160 = vadd.f32 %v155, %v159
        %161 = vst [vmem:[#allocation11] sm:$0xff] %v160
      $region37: #{tpu_custom_call.1} parent=31 // loop_footer
        %s142 = sadd.s32 1, %s138
      $region38: #{tpu_custom_call.1} parent=31 // loop_footer_branch
        %137 = sbr.rel target = $region34
      $region39: #{tpu_custom_call.1} parent=31 // loop_exit
        _
    $region32: #{tpu_custom_call.1} parent=1 // pred_fallthru
      _
    // Predicated region
    $region40: #{tpu_custom_call.1} parent=1 // pred_check
      _
    $region41: #{tpu_custom_call.1} parent=1 // pred_check_branch
      %163 = sbr.rel (0) target = $region43
    $region42: #{tpu_custom_call.1} parent=1 // pred_region
      %165 = vsyncadd [#allocation8], 0
      %s167 = sshll.u32 [#allocation11], 4
      %s168 = int_to_ptr.vmem [resolvable:$true] %s167
      %s169 = sshll.u32 %s4, 4
      %s170 = int_to_ptr.hbm [resolvable:$true] %s169
      %172 = dma.vmem_to_hbm [thread:$0]  %s168, 128, %s170, [#allocation8]
    $region43: #{tpu_custom_call.1} parent=1 // pred_fallthru
      _
    // Predicated region
    $region44: #{tpu_custom_call.1} parent=1 // pred_check
      _
    $region45: #{tpu_custom_call.1} parent=1 // pred_check_branch
      %174 = sbr.rel (0) target = $region47
    $region46: #{tpu_custom_call.1} parent=1 // pred_region
      %176 = dma.done [#allocation8], 128
    $region47: #{tpu_custom_call.1} parent=1 // pred_fallthru
      _
    %177 = vsyncpa [#allocation7], 1
    %178 = vsyncpa [#allocation10], 1
    %179 = vsyncpa [#allocation8], 1

</llo_original>
